<compile_context>
chip_gen: v5e
topology: v5e:2x2
jax: 0.10.0
libtpu: 0.0.40
codegen_flags: <defaults>
</compile_context>

<pallas_src>
import functools
import math

import jax
import jax.numpy as jnp
from jax.experimental import pallas as pl
from jax.experimental.pallas import tpu as pltpu

LANE = 128       # vreg lane width (last-dim tiling unit)
SUBLANE = 8      # vreg sublane count (second-last-dim tiling unit)
NEG_BIG = -1e30  # finite "-inf" fill for padded class logits (exp underflows to 0)


def _round_up(n, m):
    return ((n + m - 1) // m) * m


def dannet_kernel(x_ref, w1_ref, b1_ref, w2_ref, b2_ref, out_ref):
    """One batch tile: sharedNet (Linear + LeakyReLU(0.1)) -> cls_fc -> log_softmax."""
    # Hoist bias loads once per tile (no broadcast re-materialization).
    b1 = b1_ref[...]
    b2 = b2_ref[...]

    # sharedNet: Linear(D -> F) + LeakyReLU(0.1).  bf16 operands, f32 accumulation.
    h = jnp.dot(x_ref[...], w1_ref[...], preferred_element_type=jnp.float32) + b1
    h = jnp.maximum(h, 0.1 * h)  # single VPU vmax instead of cmp+select+mul

    # cls_fc: Linear(F -> C_pad).  Padded class columns carry bias = -1e30.
    logits = jnp.dot(h.astype(w2_ref.dtype), w2_ref[...],
                     preferred_element_type=jnp.float32) + b2

    # Numerically stable log_softmax over the (padded) class axis; padded lanes
    # contribute exp(-1e30 - m) == 0 to the sum.
    m = jnp.max(logits, axis=-1, keepdims=True)
    z = logits - m
    lse = jnp.log(jnp.sum(jnp.exp(z), axis=-1, keepdims=True))
    out_ref[...] = (z - lse).astype(out_ref.dtype)


@functools.partial(jax.jit, static_argnames=("max_tile_b",))
def dannet_forward(x, w1, b1, w2, b2, *, max_tile_b=512):
    """Returns (log_probs, loss).  loss == 0 in eval mode (no MMD)."""
    B, D = x.shape
    F_ = w1.shape[1]
    C = w2.shape[1]

    # Lane-pad feature / class axes; sublane-pad + tile the batch axis.
    D_p = _round_up(D, LANE)
    F_p = _round_up(F_, LANE)
    C_p = _round_up(C, LANE)
    tile_b = min(max_tile_b, _round_up(B, SUBLANE))
    B_p = _round_up(B, tile_b)

    # Zero padding is numerically inert for the matmuls; padded class-bias lanes
    # get -1e30 so they drop out of the log-sum-exp (NOT 0, which would pollute it).
    x_p = jnp.zeros((B_p, D_p), jnp.bfloat16).at[:B, :D].set(x.astype(jnp.bfloat16))
    w1_p = jnp.zeros((D_p, F_p), jnp.bfloat16).at[:D, :F_].set(w1.astype(jnp.bfloat16))
    b1_p = jnp.zeros((1, F_p), jnp.float32).at[:, :F_].set(b1.reshape(1, F_))
    w2_p = jnp.zeros((F_p, C_p), jnp.bfloat16).at[:F_, :C].set(w2.astype(jnp.bfloat16))
    b2_p = jnp.full((1, C_p), NEG_BIG, jnp.float32).at[:, :C].set(b2.reshape(1, C))

    grid = (B_p // tile_b,)
    log_probs_p = pl.pallas_call(
        dannet_kernel,
        out_shape=jax.ShapeDtypeStruct((B_p, C_p), jnp.float32),
        grid=grid,
        in_specs=[
            pl.BlockSpec((tile_b, D_p), lambda i: (i, 0)),  # activation tile streams
            pl.BlockSpec((D_p, F_p), lambda i: (0, 0)),     # weights resident across grid
            pl.BlockSpec((1, F_p), lambda i: (0, 0)),
            pl.BlockSpec((F_p, C_p), lambda i: (0, 0)),
            pl.BlockSpec((1, C_p), lambda i: (0, 0)),
        ],
        out_specs=pl.BlockSpec((tile_b, C_p), lambda i: (i, 0)),  # lane-dense output
        compiler_params=pltpu.CompilerParams(
            # Independent batch tiles -> shard grid across v7x's 2 TensorCores.
            dimension_semantics=("parallel",),
            # Budget against v7x's 64 MiB physical VMEM (leave headroom).
            vmem_limit_bytes=48 * 1024 * 1024,
        ),
    )(x_p, w1_p, b1_p, w2_p, b2_p)

    log_probs = log_probs_p[:B, :C]
    loss = jnp.zeros((), jnp.float32)
    # TODO(synk): training-mode MMD RBF loss (external `mmd` module) not implemented.
    return log_probs, loss


def kaiming_normal(key, shape, a=0.1):
    # nn.init.kaiming_normal_(w, a=a): std = gain / sqrt(fan_in),
    # gain = sqrt(2 / (1 + a^2)); weights stored as (in_dim, out_dim).
    fan_in = shape[0]
    gain = math.sqrt(2.0 / (1.0 + a * a))
    std = gain / math.sqrt(fan_in)
    return std * jax.random.normal(key, shape, dtype=jnp.float32)


if __name__ == "__main__":
    # Small deterministic shapes consistent with the module.
    B = 8            # batch
    D_IN = 32        # raw input features fed to sharedNet
    N_FEATURES = 32  # sharedNet output dim == cls_fc input dim
    NUM_CLASSES = 5  # default num_classes

    key = jax.random.PRNGKey(0)
    kx, kw1, kw2 = jax.random.split(key, 3)

    x = jax.random.normal(kx, (B, D_IN), dtype=jnp.float32)

    # sharedNet Linear (kaiming_normal_, a=0.1; bias=0)
    w1 = kaiming_normal(kw1, (D_IN, N_FEATURES), a=0.1)
    b1 = jnp.zeros((N_FEATURES,), jnp.float32)
    # cls_fc Linear (kaiming_normal_, a=0.1; bias=0)
    w2 = kaiming_normal(kw2, (N_FEATURES, NUM_CLASSES), a=0.1)
    b2 = jnp.zeros((NUM_CLASSES,), jnp.float32)

    log_probs, loss = dannet_forward(x, w1, b1, w2, b2)
    jax.block_until_ready(log_probs)
    jax.block_until_ready(loss)

    # sanity 1: shape and row-normalization of log_softmax
    assert log_probs.shape == (B, NUM_CLASSES)
    probs_sum = jnp.sum(jnp.exp(log_probs), axis=1)
    assert bool(jnp.all(jnp.abs(probs_sum - 1.0) < 1e-3))

    # sanity 2: pure-JAX reference with the same bf16 weight/activation rounding
    xw1 = (x.astype(jnp.bfloat16).astype(jnp.float32)
           @ w1.astype(jnp.bfloat16).astype(jnp.float32) + b1)
    h_ref = jnp.maximum(xw1, 0.1 * xw1)
    lg_ref = (h_ref.astype(jnp.bfloat16).astype(jnp.float32)
              @ w2.astype(jnp.bfloat16).astype(jnp.float32) + b2)
    ref = jax.nn.log_softmax(lg_ref, axis=1)
    assert bool(jnp.max(jnp.abs(ref - log_probs)) < 5e-2)

    print("KERNEL_OK")
</pallas_src>

<mosaic_0001>
module attributes {stable_mosaic.version = 11 : i64} {
  func.func @dannet_kernel(%arg0: i32, %arg1: memref<8x128xbf16, #tpu.memory_space<vmem>>, %arg2: memref<128x128xbf16, #tpu.memory_space<vmem>>, %arg3: memref<1x128xf32, #tpu.memory_space<vmem>>, %arg4: memref<128x128xbf16, #tpu.memory_space<vmem>>, %arg5: memref<1x128xf32, #tpu.memory_space<vmem>>, %arg6: memref<8x128xf32, #tpu.memory_space<vmem>>) attributes {dimension_semantics = [#tpu.dimension_semantics<parallel>], iteration_bounds = array<i64: 1>, scalar_prefetch = 0 : i64, scratch_operands = 0 : i64, tpu.core_type = #tpu.core_type<tc>, window_params = [{transform_indices = @transform_0, window_bounds = array<i64: 8, 128>}, {pipeline_mode = #tpu.pipeline_mode<synchronous>, transform_indices = @transform_1, window_bounds = array<i64: 128, 128>}, {pipeline_mode = #tpu.pipeline_mode<synchronous>, transform_indices = @transform_2, window_bounds = array<i64: 1, 128>}, {pipeline_mode = #tpu.pipeline_mode<synchronous>, transform_indices = @transform_3, window_bounds = array<i64: 128, 128>}, {pipeline_mode = #tpu.pipeline_mode<synchronous>, transform_indices = @transform_4, window_bounds = array<i64: 1, 128>}, {transform_indices = @transform_5, window_bounds = array<i64: 8, 128>}]} {
    %c0 = arith.constant 0 : index
    %c0_0 = arith.constant 0 : index
    %0 = vector.load %arg3[%c0, %c0_0] : memref<1x128xf32, #tpu.memory_space<vmem>>, vector<1x128xf32>
    %c0_1 = arith.constant 0 : index
    %c0_2 = arith.constant 0 : index
    %1 = vector.load %arg5[%c0_1, %c0_2] : memref<1x128xf32, #tpu.memory_space<vmem>>, vector<1x128xf32>
    %c0_3 = arith.constant 0 : index
    %c0_4 = arith.constant 0 : index
    %2 = vector.load %arg1[%c0_3, %c0_4] : memref<8x128xbf16, #tpu.memory_space<vmem>>, vector<8x128xbf16>
    %c0_5 = arith.constant 0 : index
    %c0_6 = arith.constant 0 : index
    %3 = vector.load %arg2[%c0_5, %c0_6] : memref<128x128xbf16, #tpu.memory_space<vmem>>, vector<128x128xbf16>
    %cst = arith.constant dense<0.000000e+00> : vector<8x128xf32>
    %4 = tpu.matmul %2, %3, %cst {dimension_numbers = #tpu.dot_dimension_numbers<[1], [0], [0], [1], [0, 0, 1, 1], [], []>} : vector<8x128xbf16>, vector<128x128xbf16>, vector<8x128xf32> -> vector<8x128xf32>
    %5 = vector.broadcast %0 : vector<1x128xf32> to vector<8x128xf32>
    %6 = arith.addf %4, %5 : vector<8x128xf32>
    %cst_7 = arith.constant 1.000000e-01 : f32
    %7 = vector.broadcast %cst_7 : f32 to vector<8x128xf32>
    %8 = arith.mulf %7, %6 : vector<8x128xf32>
    %9 = arith.maximumf %6, %8 : vector<8x128xf32>
    %10 = arith.truncf %9 : vector<8x128xf32> to vector<8x128xbf16>
    %c0_8 = arith.constant 0 : index
    %c0_9 = arith.constant 0 : index
    %11 = vector.load %arg4[%c0_8, %c0_9] : memref<128x128xbf16, #tpu.memory_space<vmem>>, vector<128x128xbf16>
    %cst_10 = arith.constant dense<0.000000e+00> : vector<8x128xf32>
    %12 = tpu.matmul %10, %11, %cst_10 {dimension_numbers = #tpu.dot_dimension_numbers<[1], [0], [0], [1], [0, 0, 1, 1], [], []>} : vector<8x128xbf16>, vector<128x128xbf16>, vector<8x128xf32> -> vector<8x128xf32>
    %13 = vector.broadcast %1 : vector<1x128xf32> to vector<8x128xf32>
    %14 = arith.addf %12, %13 : vector<8x128xf32>
    %cst_11 = arith.constant dense<0xFF800000> : vector<8xf32>
    %15 = vector.multi_reduction <maximumf>, %14, %cst_11 [1] : vector<8x128xf32> to vector<8xf32>
    %16 = vector.shape_cast %15 : vector<8xf32> to vector<8x1xf32>
    %17 = vector.broadcast %16 : vector<8x1xf32> to vector<8x128xf32>
    %18 = arith.subf %14, %17 : vector<8x128xf32>
    %19 = math.exp %18 : vector<8x128xf32>
    %cst_12 = arith.constant dense<0.000000e+00> : vector<8xf32>
    %20 = vector.multi_reduction <add>, %19, %cst_12 [1] : vector<8x128xf32> to vector<8xf32>
    %21 = vector.shape_cast %20 : vector<8xf32> to vector<8x1xf32>
    %22 = math.log %21 : vector<8x1xf32>
    %23 = vector.broadcast %22 : vector<8x1xf32> to vector<8x128xf32>
    %24 = arith.subf %18, %23 : vector<8x128xf32>
    %c0_13 = arith.constant 0 : index
    %c0_14 = arith.constant 0 : index
    %25 = vector.load %arg6[%c0_13, %c0_14] : memref<8x128xf32, #tpu.memory_space<vmem>>, vector<8x128xf32>
    tpu.vector_store %arg6[%c0_13, %c0_14], %24 {strides = array<i32>} : memref<8x128xf32, #tpu.memory_space<vmem>>, vector<8x128xf32>,
    return
  }
  func.func @transform_0(%arg0: i32) -> (i32, i32) {
    %c0_i32 = arith.constant 0 : i32
    %c0_i32_0 = arith.constant 0 : i32
    return %arg0, %c0_i32 : i32, i32
  }
  func.func @transform_1(%arg0: i32) -> (i32, i32) {
    %c0_i32 = arith.constant 0 : i32
    %c0_i32_0 = arith.constant 0 : i32
    %c0_i32_1 = arith.constant 0 : i32
    return %c0_i32, %c0_i32_0 : i32, i32
  }
  func.func @transform_2(%arg0: i32) -> (i32, i32) {
    %c0_i32 = arith.constant 0 : i32
    %c0_i32_0 = arith.constant 0 : i32
    %c0_i32_1 = arith.constant 0 : i32
    return %c0_i32, %c0_i32_0 : i32, i32
  }
  func.func @transform_3(%arg0: i32) -> (i32, i32) {
    %c0_i32 = arith.constant 0 : i32
    %c0_i32_0 = arith.constant 0 : i32
    %c0_i32_1 = arith.constant 0 : i32
    return %c0_i32, %c0_i32_0 : i32, i32
  }
  func.func @transform_4(%arg0: i32) -> (i32, i32) {
    %c0_i32 = arith.constant 0 : i32
    %c0_i32_0 = arith.constant 0 : i32
    %c0_i32_1 = arith.constant 0 : i32
    return %c0_i32, %c0_i32_0 : i32, i32
  }
  func.func @transform_5(%arg0: i32) -> (i32, i32) {
    %c0_i32 = arith.constant 0 : i32
    %c0_i32_0 = arith.constant 0 : i32
    return %arg0, %c0_i32 : i32, i32
  }
}

</mosaic_0001>

<llo_original>
// kernel: dannet_forward.1
$region0: #{dannet_forward.1}
  #allocation0 [shape = 'u32[]', space=smem, size = 0x4, offset = 0x4, fixed_abs, tag = 'smem constant byte address 0x4 - core index']
  #allocation1 [shape = 'u32[72,128]{1,0:T(1,128)}', space=vmem, size = 0x9000, scoped, tag = 'internal scratch']
  %s0 = inlined_call_operand.vmem [shape: bf16[8,128], index: 0, kind: input, shape index: {}]
  %s1 = inlined_call_operand.vmem [shape: bf16[128,128], index: 1, kind: input, shape index: {}]
  %s2 = inlined_call_operand.vmem [shape: f32[1,128], index: 2, kind: input, shape index: {}]
  %s3 = inlined_call_operand.vmem [shape: bf16[128,128], index: 3, kind: input, shape index: {}]
  %s4 = inlined_call_operand.vmem [shape: f32[1,128], index: 4, kind: input, shape index: {}]
  %s5 = inlined_call_operand.hbm [shape: f32[8,128], index: 5, kind: output, shape index: {}]
  %s6 = sld [smem:[#allocation0]]
  $region30: #{dannet_forward.1} parent=0
    _
  %s8 = ssub.s32 1, %s6
  %s9 = scalar_select 0, %s8, %s6
  $region1: #{dannet_forward.1} parent=0
    #allocation2 [shape = 'u8[4096]{0}', space=vmem, size = 0x1000, scoped, tag = 'output window, operand 0, single buffered']
    #allocation3 [shape = 's32[1]{0}', space=sflag, size = 0x4, scoped, tag = 'scoped memory for dannet_forward.1']
    %10 = vsyncpa [#allocation3], 0
    // Predicated region
    $region2: #{dannet_forward.1} parent=1 // pred_check
      _
    $region3: #{dannet_forward.1} parent=1 // pred_check_branch
      %12 = sbr.rel (0) target = $region5
    $region4: #{dannet_forward.1} parent=1 // pred_region
      _
    $region5: #{dannet_forward.1} parent=1 // pred_fallthru
      _
    // Predicated region
    $region6: #{dannet_forward.1} parent=1 // pred_check
      _
    $region7: #{dannet_forward.1} parent=1 // pred_check_branch
      %14 = sbr.rel (0) target = $region9
    $region8: #{dannet_forward.1} parent=1 // pred_region
      _
    $region9: #{dannet_forward.1} parent=1 // pred_fallthru
      _
    // Predicated region
    $region10: #{dannet_forward.1} parent=1 // pred_check
      _
    $region11: #{dannet_forward.1} parent=1 // pred_check_branch
      %16 = sbr.rel (0) target = $region13
    $region12: #{dannet_forward.1} parent=1 // pred_region
      _
    $region13: #{dannet_forward.1} parent=1 // pred_fallthru
      _
    // Predicated region
    $region14: #{dannet_forward.1} parent=1 // pred_check
      _
    $region15: #{dannet_forward.1} parent=1 // pred_check_branch
      %18 = sbr.rel (0) target = $region17
    $region16: #{dannet_forward.1} parent=1 // pred_region
      _
    $region17: #{dannet_forward.1} parent=1 // pred_fallthru
      _
    // Predicated region
    $region18: #{dannet_forward.1} parent=1 // pred_check
      _
    $region19: #{dannet_forward.1} parent=1 // pred_check_branch
      %20 = sbr.rel (0) target = $region21
    $region20: #{dannet_forward.1} parent=1 // pred_region
      _
    $region21: #{dannet_forward.1} parent=1 // pred_fallthru
      _
    %v21 = vld [vmem:[%s2] sm:$0x1]
    %v22 = vld [vmem:[%s4] sm:$0x1]
    %v23 = vld [vmem:[%s0] sm:$0xf]
    %v24 = vld [vmem:[%s1] sm:$0xf]
    %v25 = vld [vmem:[%s1 + $0x4] sm:$0xf]
    %v26 = vld [vmem:[%s1 + $0x8] sm:$0xf]
    %v27 = vld [vmem:[%s1 + $0xc] sm:$0xf]
    %v28 = vld [vmem:[%s1 + $0x10] sm:$0xf]
    %v29 = vld [vmem:[%s1 + $0x14] sm:$0xf]
    %v30 = vld [vmem:[%s1 + $0x18] sm:$0xf]
    %v31 = vld [vmem:[%s1 + $0x1c] sm:$0xf]
    %v32 = vld [vmem:[%s1 + $0x20] sm:$0xf]
    %v33 = vld [vmem:[%s1 + $0x24] sm:$0xf]
    %v34 = vld [vmem:[%s1 + $0x28] sm:$0xf]
    %v35 = vld [vmem:[%s1 + $0x2c] sm:$0xf]
    %v36 = vld [vmem:[%s1 + $0x30] sm:$0xf]
    %v37 = vld [vmem:[%s1 + $0x34] sm:$0xf]
    %v38 = vld [vmem:[%s1 + $0x38] sm:$0xf]
    %v39 = vld [vmem:[%s1 + $0x3c] sm:$0xf]
    %v41 = vperm.slane %v21, 0
    %v59 = vunpack.c.l.b16 %v24
    %v60 = vunpack.c.l.b16 %v25
    %v61 = vunpack.c.l.b16 %v26
    %v62 = vunpack.c.l.b16 %v27
    %v63 = vunpack.c.l.b16 %v28
    %v64 = vunpack.c.l.b16 %v29
    %v65 = vunpack.c.l.b16 %v30
    %v66 = vunpack.c.l.b16 %v31
    %v67 = vunpack.c.l.b16 %v32
    %v68 = vunpack.c.l.b16 %v33
    %v69 = vunpack.c.l.b16 %v34
    %v70 = vunpack.c.l.b16 %v35
    %v71 = vunpack.c.l.b16 %v36
    %v72 = vunpack.c.l.b16 %v37
    %v73 = vunpack.c.l.b16 %v38
    %v74 = vunpack.c.l.b16 %v39
    %v75 = vpack.c.b16 %v60, %v59
    %v76 = vpack.c.b16 %v62, %v61
    %v77 = vpack.c.b16 %v64, %v63
    %v78 = vpack.c.b16 %v66, %v65
    %v79 = vpack.c.b16 %v68, %v67
    %v80 = vpack.c.b16 %v70, %v69
    %v81 = vpack.c.b16 %v72, %v71
    %v82 = vpack.c.b16 %v74, %v73
    %91 = vmatpush.bf16.msra.mxu0 %v82
    %92 = vmatpush.bf16.msra.mxu0 %v81
    %93 = vmatpush.bf16.msra.mxu0 %v80
    %94 = vmatpush.bf16.msra.mxu0 %v79
    %95 = vmatpush.bf16.msra.mxu0 %v78
    %96 = vmatpush.bf16.msra.mxu0 %v77
    %97 = vmatpush.bf16.msra.mxu0 %v76
    %98 = vmatpush.bf16.msra.mxu0 %v75
    %99 = vmatmul.bf16.gmra.mxu0 %v23
    %v100 = vpop.f32.mrf.mxu0
    %v101 = vadd.f32 %v41, %v100
    %v102 = vpop.f32.mrf.mxu0
    %103 = vdwg.mxu0
    %v104 = vmul.f32 %v101, 0.1
    %v105 = vmax.f32 %v101, %v104
    %v106 = vpack.c.bf16 %v105, %v105
    %v107 = vld [vmem:[%s3] sm:$0xf]
    %v108 = vld [vmem:[%s3 + $0x4] sm:$0xf]
    %v109 = vld [vmem:[%s3 + $0x8] sm:$0xf]
    %v110 = vld [vmem:[%s3 + $0xc] sm:$0xf]
    %v111 = vld [vmem:[%s3 + $0x10] sm:$0xf]
    %v112 = vld [vmem:[%s3 + $0x14] sm:$0xf]
    %v113 = vld [vmem:[%s3 + $0x18] sm:$0xf]
    %v114 = vld [vmem:[%s3 + $0x1c] sm:$0xf]
    %v115 = vld [vmem:[%s3 + $0x20] sm:$0xf]
    %v116 = vld [vmem:[%s3 + $0x24] sm:$0xf]
    %v117 = vld [vmem:[%s3 + $0x28] sm:$0xf]
    %v118 = vld [vmem:[%s3 + $0x2c] sm:$0xf]
    %v119 = vld [vmem:[%s3 + $0x30] sm:$0xf]
    %v120 = vld [vmem:[%s3 + $0x34] sm:$0xf]
    %v121 = vld [vmem:[%s3 + $0x38] sm:$0xf]
    %v122 = vld [vmem:[%s3 + $0x3c] sm:$0xf]
    %v124 = vperm.slane %v22, 0
    %v142 = vunpack.c.l.b16 %v107
    %v143 = vunpack.c.l.b16 %v108
    %v144 = vunpack.c.l.b16 %v109
    %v145 = vunpack.c.l.b16 %v110
    %v146 = vunpack.c.l.b16 %v111
    %v147 = vunpack.c.l.b16 %v112
    %v148 = vunpack.c.l.b16 %v113
    %v149 = vunpack.c.l.b16 %v114
    %v150 = vunpack.c.l.b16 %v115
    %v151 = vunpack.c.l.b16 %v116
    %v152 = vunpack.c.l.b16 %v117
    %v153 = vunpack.c.l.b16 %v118
    %v154 = vunpack.c.l.b16 %v119
    %v155 = vunpack.c.l.b16 %v120
    %v156 = vunpack.c.l.b16 %v121
    %v157 = vunpack.c.l.b16 %v122
    %v158 = vpack.c.b16 %v143, %v142
    %v159 = vpack.c.b16 %v145, %v144
    %v160 = vpack.c.b16 %v147, %v146
    %v161 = vpack.c.b16 %v149, %v148
    %v162 = vpack.c.b16 %v151, %v150
    %v163 = vpack.c.b16 %v153, %v152
    %v164 = vpack.c.b16 %v155, %v154
    %v165 = vpack.c.b16 %v157, %v156
    %174 = vmatpush.bf16.msra.mxu0 %v165
    %175 = vmatpush.bf16.msra.mxu0 %v164
    %176 = vmatpush.bf16.msra.mxu0 %v163
    %177 = vmatpush.bf16.msra.mxu0 %v162
    %178 = vmatpush.bf16.msra.mxu0 %v161
    %179 = vmatpush.bf16.msra.mxu0 %v160
    %180 = vmatpush.bf16.msra.mxu0 %v159
    %181 = vmatpush.bf16.msra.mxu0 %v158
    %182 = vmatmul.bf16.gmra.mxu0 %v106
    %v183 = vpop.f32.mrf.mxu0
    %v184 = vadd.f32 %v124, %v183
    %v185 = vpop.f32.mrf.mxu0
    %186 = vdwg.mxu0
    %187 = vmax.xlane.f32.xlu0 %v184
    %v188 = vpop.xlane.xlu0 %187
    %v189 = vsub.f32 %v184, %v188
    %v190 = vmul.f32 %v189, 1.442695
    %v191 = vpow.pop %v190
    %192 = vadd.xlane.f32.xlu0 %v191
    %v193 = vpop.xlane.xlu0 %192
    %v194 = vlog2.pop %v193
    %v195 = vmul.f32 %v194, 0.6931472
    %v196 = vsub.f32 %v189, %v195
    %197 = vst [vmem:[#allocation2] sm:$0xff] %v196
    // Predicated region
    $region22: #{dannet_forward.1} parent=1 // pred_check
      _
    $region23: #{dannet_forward.1} parent=1 // pred_check_branch
      %199 = sbr.rel (0) target = $region25
    $region24: #{dannet_forward.1} parent=1 // pred_region
      %201 = vsyncadd [#allocation3], 0
      %s203 = sshll.u32 [#allocation2], 4
      %s204 = int_to_ptr.vmem [resolvable:$true] %s203
      %s205 = sshll.u32 %s5, 4
      %s206 = int_to_ptr.hbm [resolvable:$true] %s205
      %208 = dma.vmem_to_hbm [thread:$0]  %s204, 128, %s206, [#allocation3]
    $region25: #{dannet_forward.1} parent=1 // pred_fallthru
      _
    // Predicated region
    $region26: #{dannet_forward.1} parent=1 // pred_check
      _
    $region27: #{dannet_forward.1} parent=1 // pred_check_branch
      %210 = sbr.rel (0) target = $region29
    $region28: #{dannet_forward.1} parent=1 // pred_region
      %212 = dma.done [#allocation3], 128
    $region29: #{dannet_forward.1} parent=1 // pred_fallthru
      _
    %213 = vsyncpa [#allocation3], 1

</llo_original>
